<compile_context>
chip_gen: v7x
topology: tpu7x:2x2x1
jax: 0.10.0
libtpu: 0.0.40
codegen_flags: <defaults>
</compile_context>

<pallas_src>
from functools import partial

import numpy as np
import jax
import jax.numpy as jnp
from jax.experimental import pallas as pl
from jax.experimental.pallas import tpu as pltpu


def _add_bias_kernel(x_ref, bias_ref, o_ref):
    # x_ref: (TB, NN) lane-dense tile; bias_ref: (1, NN) resident bias row.
    # One whole-tile VPU add (sublane broadcast of the bias row); accumulate in
    # the bias dtype (fp32, or bf16 when x is bf16) and cast back to x.dtype.
    acc = x_ref[...].astype(bias_ref.dtype) + bias_ref[...]
    o_ref[...] = acc.astype(o_ref.dtype)


def make_local_position_bias(rel_pos, ws: int):
    """Static gather rel_pos[pos[:,:,0], pos[:,:,1]] -> (ws*ws, ws*ws) bias."""
    coords = np.array([(p1, p2) for p1 in range(ws) for p2 in range(ws)],
                      dtype=np.int32)                       # (N, 2), static
    pos = coords[None, :, :] - coords[:, None, :] + ws - 1  # (N, N, 2), static
    return rel_pos[pos[:, :, 0], pos[:, :, 1]]              # (N, N)


def _round_up(a: int, b: int) -> int:
    return (a + b - 1) // b * b


@partial(jax.jit, static_argnames=("ws",))
def local_position_embedding(x, rel_pos, ws: int):
    """x: (..., N, N) with N = ws*ws.  Returns x + relative-position bias."""
    n = ws * ws
    nn = n * n
    assert x.shape[-1] == n and x.shape[-2] == n, "x trailing dims must be (ws*ws, ws*ws)"

    lead = x.shape[:-2]
    bh = int(np.prod(lead)) if lead else 1

    # Compute dtype: native bf16 add on v6e/v7x when x is bf16 (kernel is
    # DMA-bound either way; Mosaic widens internally on v5e), fp32 otherwise.
    compute_dtype = jnp.bfloat16 if x.dtype == jnp.bfloat16 else jnp.float32

    # Tiny static gather; under jit this fuses with the parameter load.
    bias = make_local_position_bias(rel_pos, ws).astype(compute_dtype).reshape(1, nn)

    # Lane-dense 2D layout (row-major reshape, no copy).
    x_flat = x.reshape(bh, nn)

    # Generation-aware VMEM budget.
    try:
        vmem_cap = int(pltpu.get_tpu_info().vmem_capacity_bytes)
    except Exception:  # pragma: no cover - conservative fallback (v7x per-TC)
        vmem_cap = 64 << 20
    vmem_ceiling = max(vmem_cap - (16 << 20), 32 << 20)

    itemsize = jnp.dtype(x.dtype).itemsize
    row_bytes = nn * itemsize

    # ~8 MiB tiles (amortizes the ~0.35us/step overhead even at v7x's 3.2 TB/s),
    # but keep 4x tile (in + out, double-buffered) under the VMEM ceiling.
    target_tile_bytes = min(8 << 20, max(1 << 20, (vmem_ceiling - (8 << 20)) // 4))
    tb = (target_tile_bytes // row_bytes) // 8 * 8
    tb = max(8, min(tb, _round_up(bh, 8)))
    # Guarantee >= 2 grid steps when possible so the "parallel" axis shards
    # across v7x's two TensorCores (each with its own HBM path).
    while tb > 8 and pl.cdiv(bh, tb) < 2:
        tb = max(8, (tb // 2) // 8 * 8)

    grid = (pl.cdiv(bh, tb),)  # ragged tail: OOB reads padded, OOB writes masked

    tile_bytes = tb * row_bytes
    bias_bytes = bias.size * jnp.dtype(compute_dtype).itemsize
    vmem_bytes = int(min(max(4 * tile_bytes + 2 * bias_bytes + (4 << 20), 32 << 20),
                         vmem_ceiling))

    cost = pl.CostEstimate(
        flops=bh * nn,
        transcendentals=0,
        bytes_accessed=2 * bh * row_bytes + bias_bytes,
    )

    out = pl.pallas_call(
        _add_bias_kernel,
        out_shape=jax.ShapeDtypeStruct((bh, nn), x.dtype),
        grid_spec=pltpu.PrefetchScalarGridSpec(
            num_scalar_prefetch=0,
            grid=grid,
            in_specs=[
                pl.BlockSpec((tb, nn), lambda i: (i, 0)),   # lane-dense row block
                pl.BlockSpec((1, nn), lambda i: (0, 0)),    # bias resident in VMEM
            ],
            out_specs=pl.BlockSpec((tb, nn), lambda i: (i, 0)),
        ),
        compiler_params=pltpu.CompilerParams(
            dimension_semantics=("parallel",),
            vmem_limit_bytes=vmem_bytes,
        ),
        cost_estimate=cost,
    )(x_flat, bias)

    return out.reshape(*lead, n, n)


if __name__ == "__main__":
    ws = 4                       # window size -> N = ws*ws = 16, N*N = 256
    n = ws * ws

    key = jax.random.PRNGKey(0)
    k_rel, k_x1, k_x2 = jax.random.split(key, 3)
    rel_pos = jax.random.normal(k_rel, (2 * ws - 1, 2 * ws - 1), dtype=jnp.float32)
    bias_ref = np.asarray(make_local_position_bias(rel_pos, ws))   # (N, N) reference

    # Small shape consistent with the module: attention logits (B, H, N, N).
    x1 = jax.random.normal(k_x1, (2, 4, n, n), dtype=jnp.float32)
    out1 = jax.block_until_ready(local_position_embedding(x1, rel_pos, ws))
    np.testing.assert_allclose(np.asarray(out1), np.asarray(x1) + bias_ref,
                               rtol=1e-6, atol=1e-6)

    # Ragged leading extent: exercises the masked last block and a >=2-step
    # "parallel" grid (bh = 15, tb = 8 -> 2 grid steps).
    x2 = jax.random.normal(k_x2, (3, 5, n, n), dtype=jnp.float32)
    out2 = jax.block_until_ready(local_position_embedding(x2, rel_pos, ws))
    np.testing.assert_allclose(np.asarray(out2), np.asarray(x2) + bias_ref,
                               rtol=1e-6, atol=1e-6)

    print("KERNEL_OK")
</pallas_src>

<mosaic_0001>
module attributes {stable_mosaic.version = 11 : i64} {
  func.func @_add_bias_kernel(%arg0: i32, %arg1: memref<8x256xf32, #tpu.memory_space<vmem>>, %arg2: memref<1x256xf32, #tpu.memory_space<vmem>>, %arg3: memref<8x256xf32, #tpu.memory_space<vmem>>) attributes {dimension_semantics = [#tpu.dimension_semantics<parallel>], iteration_bounds = array<i64: 1>, scalar_prefetch = 0 : i64, scratch_operands = 0 : i64, tpu.core_type = #tpu.core_type<tc>, window_params = [{transform_indices = @transform_0, window_bounds = array<i64: 8, 256>}, {pipeline_mode = #tpu.pipeline_mode<synchronous>, transform_indices = @transform_1, window_bounds = array<i64: 1, 256>}, {transform_indices = @transform_2, window_bounds = array<i64: 8, 256>}]} {
    %c0 = arith.constant 0 : index
    %c0_0 = arith.constant 0 : index
    %0 = vector.load %arg1[%c0, %c0_0] : memref<8x256xf32, #tpu.memory_space<vmem>>, vector<8x256xf32>
    %c0_1 = arith.constant 0 : index
    %c0_2 = arith.constant 0 : index
    %1 = vector.load %arg2[%c0_1, %c0_2] : memref<1x256xf32, #tpu.memory_space<vmem>>, vector<1x256xf32>
    %2 = vector.broadcast %1 : vector<1x256xf32> to vector<8x256xf32>
    %3 = arith.addf %0, %2 : vector<8x256xf32>
    %c0_3 = arith.constant 0 : index
    %c0_4 = arith.constant 0 : index
    %4 = vector.load %arg3[%c0_3, %c0_4] : memref<8x256xf32, #tpu.memory_space<vmem>>, vector<8x256xf32>
    tpu.vector_store %arg3[%c0_3, %c0_4], %3 {strides = array<i32>} : memref<8x256xf32, #tpu.memory_space<vmem>>, vector<8x256xf32>,
    return
  }
  func.func @transform_0(%arg0: i32) -> (i32, i32) {
    %c0_i32 = arith.constant 0 : i32
    %c0_i32_0 = arith.constant 0 : i32
    return %arg0, %c0_i32 : i32, i32
  }
  func.func @transform_1(%arg0: i32) -> (i32, i32) {
    %c0_i32 = arith.constant 0 : i32
    %c0_i32_0 = arith.constant 0 : i32
    %c0_i32_1 = arith.constant 0 : i32
    return %c0_i32, %c0_i32_0 : i32, i32
  }
  func.func @transform_2(%arg0: i32) -> (i32, i32) {
    %c0_i32 = arith.constant 0 : i32
    %c0_i32_0 = arith.constant 0 : i32
    return %arg0, %c0_i32 : i32, i32
  }
}

</mosaic_0001>

<llo_original>
// kernel: local_position_embedding.1
$region0: #{local_position_embedding.1}
  #allocation0 [shape = 'u32[]', space=smem, size = 0x4, offset = 0x4, fixed_abs, tag = 'smem constant byte address 0x4 - core index']
  #allocation1 [shape = 'u32[144,128]{1,0:T(1,128)}', space=vmem, size = 0x12000, scoped, tag = 'internal scratch']
  %s0 = inlined_call_operand.vmem [shape: f32[8,256], index: 0, kind: input, shape index: {}]
  %s1 = inlined_call_operand.vmem [shape: f32[1,256], index: 1, kind: input, shape index: {}]
  %s2 = inlined_call_operand.vmem [shape: f32[8,256], index: 2, kind: output, shape index: {}]
  %s3 = sld [smem:[#allocation0]]
  $region18: #{local_position_embedding.1} parent=0
    _
  %s5 = ssub.s32 1, %s3
  %s6 = scalar_select 0, %s5, %s3
  // Predicated region
  $region2: #{local_position_embedding.1} parent=0 // pred_check
    _
  $region3: #{local_position_embedding.1} parent=0 // pred_check_branch
    %8 = sbr.rel (0) target = $region5
  $region4: #{local_position_embedding.1} parent=0 // pred_region
    _
  $region5: #{local_position_embedding.1} parent=0 // pred_fallthru
    _
  // Predicated region
  $region6: #{local_position_embedding.1} parent=0 // pred_check
    _
  $region7: #{local_position_embedding.1} parent=0 // pred_check_branch
    %10 = sbr.rel (0) target = $region9
  $region8: #{local_position_embedding.1} parent=0 // pred_region
    _
  $region9: #{local_position_embedding.1} parent=0 // pred_fallthru
    _
  %v11 = vld [vmem:[%s0] sm:$0xff]
  %v12 = vld [vmem:[%s0 + $0x8] sm:$0xff]
  %v13 = vld [vmem:[%s1] sm:$0x3]
  %v15 = vlaneseq
  %v16 = vshrl.u32 %v15, 7
  %v17 = vsub.s32 0, %v16
  %v18 = vrot.slane %v13, %v17
  %v19 = vlaneseq
  %v20 = vshrl.u32 %v19, 7
  %v21 = vsub.s32 1, %v20
  %v22 = vrot.slane %v13, %v21
  %v25 = vadd.f32 %v11, %v18
  %v26 = vadd.f32 %v12, %v22
  %27 = vst [vmem:[%s2] sm:$0xff] %v25
  %28 = vst [vmem:[%s2 + $0x8] sm:$0xff] %v26
  // Predicated region
  $region10: #{local_position_embedding.1} parent=0 // pred_check
    _
  $region11: #{local_position_embedding.1} parent=0 // pred_check_branch
    %30 = sbr.rel (0) target = $region13
  $region12: #{local_position_embedding.1} parent=0 // pred_region
    _
  $region13: #{local_position_embedding.1} parent=0 // pred_fallthru
    _
  // Predicated region
  $region14: #{local_position_embedding.1} parent=0 // pred_check
    _
  $region15: #{local_position_embedding.1} parent=0 // pred_check_branch
    %32 = sbr.rel (0) target = $region17
  $region16: #{local_position_embedding.1} parent=0 // pred_region
    _
  $region17: #{local_position_embedding.1} parent=0 // pred_fallthru
    _

</llo_original>
